<compile_context>
chip_gen: v7x
topology: tpu7x:2x2x1
jax: 0.10.0
libtpu: 0.0.40
codegen_flags: <defaults>
</compile_context>

<pallas_src>
import functools

import jax
import jax.numpy as jnp
from jax import lax
from jax.experimental import pallas as pl
from jax.experimental.pallas import tpu as pltpu


def _round_up(x, m):
    return (x + m - 1) // m * m


def _lstm_recurrence_kernel(xp_ref, whh_hbm, h_out_ref,
                            whh_sc, h_sc, c_sc, dma_sem,
                            *, hidden_p, time_block, rem):
    """Grid = (batch_blocks [parallel], time_blocks [arbitrary/serial]).

    xp_ref:   (time_block, batch_block, 4*Hp) bf16, precomputed x@W_ih + b,
              gate order (i, f, o, g)
    whh_hbm:  (Hp, 4*Hp) bf16, recurrent weights, raw HBM ref (memory_space=ANY)
    h_out_ref:(batch_block, Hp) f32, final hidden state for this batch block
    whh_sc:   (Hp, 4*Hp) bf16 VMEM scratch (single-buffered resident W_hh)
    h_sc/c_sc:(batch_block, Hp) f32 VMEM state carried across time blocks
    """
    tb = pl.program_id(1)                 # time-block index (serial axis)
    n_tb = pl.num_programs(1)
    H = hidden_p

    @pl.when(tb == 0)
    def _():
        # Load the resident recurrent weights once per batch block and reset
        # the carried state (each batch block starts from h = c = 0).
        cp = pltpu.make_async_copy(whh_hbm, whh_sc, dma_sem.at[0])
        cp.start()
        cp.wait()
        h_sc[...] = jnp.zeros_like(h_sc)
        c_sc[...] = jnp.zeros_like(c_sc)

    w_hh = whh_sc[...]                    # bf16, hoisted; reused by every step

    def run_steps(n_steps):
        def step(t, carry):
            h, c = carry
            # Serial critical path: one bf16 MXU dot + VPU/EUP gate math (f32).
            gates = xp_ref[t].astype(jnp.float32) + jnp.dot(
                h.astype(jnp.bfloat16), w_hh,
                preferred_element_type=jnp.float32)
            # Gate order (i, f, o, g): one contiguous sigmoid, one tanh.
            sig = jax.nn.sigmoid(gates[:, :3 * H])
            i_g = sig[:, 0 * H:1 * H]
            f_g = sig[:, 1 * H:2 * H]
            o_g = sig[:, 2 * H:3 * H]
            g_g = jnp.tanh(gates[:, 3 * H:])
            c = f_g * c + i_g * g_g
            h = o_g * jnp.tanh(c)
            return h, c

        h, c = lax.fori_loop(0, n_steps, step, (h_sc[...], c_sc[...]),
                             unroll=True)
        h_sc[...] = h
        c_sc[...] = c

    if rem == 0:
        # T divides evenly into time blocks: no masking, no branch anywhere.
        run_steps(time_block)
    else:
        # Ragged tail: full unmasked loop on all but the last block, shorter
        # unmasked loop (rem steps) on the last block.
        @pl.when(tb != n_tb - 1)
        def _():
            run_steps(time_block)

        @pl.when(tb == n_tb - 1)
        def _():
            run_steps(rem)

    @pl.when(tb == n_tb - 1)
    def _():
        h_out_ref[...] = h_sc[...].astype(h_out_ref.dtype)


def simple_lstm_forward(x_tokens, params, *, time_block=16, batch_block=None):
    """x_tokens: (seq_len, batch) int32. Returns logits (batch, output_dim)."""
    emb_table = params["embedding"]            # (vocab, E)
    w_ih_t = params["w_ih_t"]                  # (E, 4H)  gate order (i,f,g,o)
    w_hh_t = params["w_hh_t"]                  # (H, 4H)
    b_all = params["b_all"]                    # (1, 4H)  (b_ih + b_hh)
    w_fc_t = params["w_fc_t"]                  # (H, O)
    b_fc = params["b_fc"]                      # (1, O)

    T, B = x_tokens.shape
    E = emb_table.shape[1]
    H = w_hh_t.shape[0]

    # Hardware-friendly padded sizes: lanes want multiples of 128, sublanes 8.
    Hp = _round_up(H, 128)

    # Time blocking: keep n_time_blocks >= 2 so the xp DMA of block i+1 overlaps
    # compute of block i; ragged tail handled in-kernel with a shorter loop.
    time_block = max(1, min(time_block, pl.cdiv(T, 2)))
    n_time_blocks = pl.cdiv(T, time_block)
    rem = T % time_block
    Tp = n_time_blocks * time_block

    # Batch blocking: the leading grid axis is "parallel" so v7x's 2 TensorCores
    # split batch blocks. For small batches keep a single block.
    Bp0 = _round_up(B, 8)
    if batch_block is None:
        n_batch_blocks = 1 if Bp0 <= 128 else 2
    else:
        n_batch_blocks = max(1, pl.cdiv(Bp0, batch_block))
    batch_block = _round_up(pl.cdiv(Bp0, n_batch_blocks), 8)
    Bp = batch_block * n_batch_blocks

    # Pad each gate block separately (slices stay 128-aligned) and reorder the
    # gate layout from PyTorch's (i, f, g, o) to (i, f, o, g) so the kernel can
    # apply one contiguous sigmoid to the first three gates.
    gate_perm = jnp.array([0, 1, 3, 2])        # (i,f,g,o) -> (i,f,o,g)

    def pad_reorder_gates(w):                  # (..., 4H) -> (..., 4*Hp)
        w4 = w.reshape(w.shape[:-1] + (4, H))
        w4 = jnp.pad(w4, [(0, 0)] * (w4.ndim - 1) + [(0, Hp - H)])
        w4 = jnp.take(w4, gate_perm, axis=-2)
        return w4.reshape(w.shape[:-1] + (4 * Hp,))

    w_ih_p = pad_reorder_gates(w_ih_t)                          # (E, 4Hp) f32
    w_hh_p = jnp.pad(pad_reorder_gates(w_hh_t),
                     ((0, Hp - H), (0, 0))).astype(jnp.bfloat16)  # (Hp, 4Hp)
    b_p = pad_reorder_gates(b_all)                              # (1, 4Hp) f32

    # Embedding gather + batch-parallel input projection (bias folded in) stay
    # in XLA: one large matmul off the serial critical path. x_proj is stored
    # bf16 in HBM (the only streamed kernel input).
    # Padded gate columns have zero weight/bias -> padded c/h columns stay 0.
    embedded = emb_table[x_tokens]                              # (T, B, E) f32
    x_proj = (embedded.reshape(T * B, E) @ w_ih_p + b_p).reshape(T, B, 4 * Hp)
    x_proj = jnp.pad(x_proj, ((0, Tp - T), (0, Bp - B), (0, 0)))
    x_proj = x_proj.astype(jnp.bfloat16)                        # (Tp, Bp, 4Hp)

    # VMEM budget from actual block sizes (xp is double-buffered by the
    # pipeline; W_hh is single-buffered scratch). Capped at 64 MiB (v7x-safe).
    xp_block_bytes = time_block * batch_block * 4 * Hp * 2      # bf16
    whh_bytes = Hp * 4 * Hp * 2                                 # bf16 scratch
    state_bytes = 2 * batch_block * Hp * 4                      # h/c f32
    out_bytes = 2 * batch_block * Hp * 4                        # out (buffered)
    vmem_needed = 2 * xp_block_bytes + whh_bytes + state_bytes + out_bytes
    vmem_limit = int(min(max(2 * vmem_needed, 32 * 1024 * 1024),
                         64 * 1024 * 1024))

    kernel = functools.partial(_lstm_recurrence_kernel,
                               hidden_p=Hp, time_block=time_block, rem=rem)

    h_final = pl.pallas_call(
        kernel,
        out_shape=jax.ShapeDtypeStruct((Bp, Hp), jnp.float32),
        grid_spec=pltpu.PrefetchScalarGridSpec(
            num_scalar_prefetch=0,
            grid=(n_batch_blocks, n_time_blocks),
            in_specs=[
                pl.BlockSpec((time_block, batch_block, 4 * Hp),
                             lambda bb, tb: (tb, bb, 0)),
                pl.BlockSpec(memory_space=pl.ANY),   # W_hh: manual single-buffer DMA
            ],
            out_specs=pl.BlockSpec((batch_block, Hp), lambda bb, tb: (bb, 0)),
            scratch_shapes=[
                pltpu.VMEM((Hp, 4 * Hp), jnp.bfloat16),        # resident W_hh
                pltpu.VMEM((batch_block, Hp), jnp.float32),    # h state
                pltpu.VMEM((batch_block, Hp), jnp.float32),    # c state
                pltpu.SemaphoreType.DMA((1,)),                 # W_hh load sem
            ],
        ),
        compiler_params=pltpu.CompilerParams(
            dimension_semantics=("parallel", "arbitrary"),
            vmem_limit_bytes=vmem_limit),
    )(x_proj, w_hh_p)

    # Final-hidden -> Linear head in XLA (lane-dense kernel output, tiny O).
    h_last = h_final[:B, :H]
    return h_last @ w_fc_t + b_fc


def init_params(key, vocab_size, embedding_dim, hidden_dim, output_dim):
    ks = jax.random.split(key, 7)
    scale = 1.0 / jnp.sqrt(hidden_dim)
    params = {
        "embedding": jax.random.normal(ks[0], (vocab_size, embedding_dim),
                                       jnp.float32),
        # Stored transposed relative to PyTorch (PyTorch W_ih: (4H, E)),
        # gate order (i, f, g, o) as in torch.nn.LSTM.
        "w_ih_t": jax.random.uniform(ks[1], (embedding_dim, 4 * hidden_dim),
                                     jnp.float32, -scale, scale),
        "w_hh_t": jax.random.uniform(ks[2], (hidden_dim, 4 * hidden_dim),
                                     jnp.float32, -scale, scale),
        "b_all": (jax.random.uniform(ks[3], (1, 4 * hidden_dim),
                                     jnp.float32, -scale, scale)
                  + jax.random.uniform(ks[4], (1, 4 * hidden_dim),
                                       jnp.float32, -scale, scale)),
        "w_fc_t": jax.random.uniform(ks[5], (hidden_dim, output_dim),
                                     jnp.float32, -scale, scale),
        "b_fc": jax.random.uniform(ks[6], (1, output_dim),
                                   jnp.float32, -scale, scale),
    }
    return params


def _reference_forward(x_tokens, params):
    """Pure-JAX f32 reference of the same forward pass, for sanity checking."""
    emb = params["embedding"][x_tokens]        # (T, B, E)
    T, B, _ = emb.shape
    H = params["w_hh_t"].shape[0]

    def step(carry, x_t):
        h, c = carry
        gates = x_t @ params["w_ih_t"] + h @ params["w_hh_t"] + params["b_all"]
        i = jax.nn.sigmoid(gates[:, 0 * H:1 * H])
        f = jax.nn.sigmoid(gates[:, 1 * H:2 * H])
        g = jnp.tanh(gates[:, 2 * H:3 * H])
        o = jax.nn.sigmoid(gates[:, 3 * H:4 * H])
        c = f * c + i * g
        h = o * jnp.tanh(c)
        return (h, c), None

    (h, _), _ = jax.lax.scan(step,
                             (jnp.zeros((B, H), jnp.float32),
                              jnp.zeros((B, H), jnp.float32)),
                             emb)
    return h @ params["w_fc_t"] + params["b_fc"]


if __name__ == "__main__":
    vocab_size, embedding_dim, hidden_dim, output_dim = 50, 16, 32, 4
    seq_len, batch = 8, 8

    key = jax.random.PRNGKey(0)
    k_tok, k_par = jax.random.split(key)
    params = init_params(k_par, vocab_size, embedding_dim, hidden_dim, output_dim)
    x = jax.random.randint(k_tok, (seq_len, batch), 0, vocab_size, jnp.int32)

    logits = simple_lstm_forward(x, params)
    jax.block_until_ready(logits)

    ref = _reference_forward(x, params)
    assert logits.shape == (batch, output_dim)
    max_diff = float(jnp.max(jnp.abs(logits - ref)))
    # bf16 MXU operands / bf16-streamed x_proj -> looser tolerance than pure f32.
    assert jnp.allclose(logits, ref, atol=3e-2, rtol=3e-2), (
        f"mismatch vs reference, max abs diff = {max_diff}")

    print("KERNEL_OK")
</pallas_src>

<mosaic_0001>
module attributes {stable_mosaic.version = 11 : i64} {
  func.func @_lstm_recurrence_kernel(%arg0: i32, %arg1: i32, %arg2: memref<4x8x512xbf16, #tpu.memory_space<vmem>>, %arg3: memref<128x512xbf16, #tpu.memory_space<any>>, %arg4: memref<8x128xf32, #tpu.memory_space<vmem>>, %arg5: memref<128x512xbf16, #tpu.memory_space<vmem>>, %arg6: memref<8x128xf32, #tpu.memory_space<vmem>>, %arg7: memref<8x128xf32, #tpu.memory_space<vmem>>, %arg8: memref<1x!tpu.dma_semaphore, #tpu.memory_space<semaphore_mem>>) attributes {dimension_semantics = [#tpu.dimension_semantics<parallel>, #tpu.dimension_semantics<arbitrary>], iteration_bounds = array<i64: 1, 2>, scalar_prefetch = 0 : i64, scratch_operands = 4 : i64, tpu.core_type = #tpu.core_type<tc>, window_params = [{transform_indices = @transform_0, window_bounds = array<i64: 4, 8, 512>}, {}, {transform_indices = @transform_2, window_bounds = array<i64: 8, 128>}]} {
    %c0_i32 = arith.constant 0 : i32
    %0 = arith.cmpi eq, %arg1, %c0_i32 : i32
    %1 = arith.extui %0 : i1 to i32
    %c0_i32_0 = arith.constant 0 : i32
    %2 = arith.cmpi ne, %1, %c0_i32_0 : i32
    scf.if %2 {
      %c0_i32_28 = arith.constant 0 : i32
      %103 = tpu.memref_slice %arg8[%c0_i32_28] : memref<1x!tpu.dma_semaphore, #tpu.memory_space<semaphore_mem>> -> memref<1x!tpu.dma_semaphore, #tpu.memory_space<semaphore_mem>>
      %104 = tpu.memref_squeeze %103 : memref<1x!tpu.dma_semaphore, #tpu.memory_space<semaphore_mem>> -> memref<!tpu.dma_semaphore, #tpu.memory_space<semaphore_mem>>
      tpu.enqueue_dma source(%arg3 : memref<128x512xbf16, #tpu.memory_space<any>>) target(%arg5 : memref<128x512xbf16, #tpu.memory_space<vmem>>) target_semaphore(%104 : memref<!tpu.dma_semaphore, #tpu.memory_space<semaphore_mem>>)
      %c0_i32_29 = arith.constant 0 : i32
      %105 = tpu.memref_slice %arg8[%c0_i32_29] : memref<1x!tpu.dma_semaphore, #tpu.memory_space<semaphore_mem>> -> memref<1x!tpu.dma_semaphore, #tpu.memory_space<semaphore_mem>>
      %106 = tpu.memref_squeeze %105 : memref<1x!tpu.dma_semaphore, #tpu.memory_space<semaphore_mem>> -> memref<!tpu.dma_semaphore, #tpu.memory_space<semaphore_mem>>
      tpu.wait_dma2 semaphore(%106 : memref<!tpu.dma_semaphore, #tpu.memory_space<semaphore_mem>>) src(%arg3 : memref<128x512xbf16, #tpu.memory_space<any>>) dst(%arg5 : memref<128x512xbf16, #tpu.memory_space<vmem>>)
      %cst_30 = arith.constant 0.000000e+00 : f32
      %107 = vector.broadcast %cst_30 : f32 to vector<8x128xf32>
      %c0_31 = arith.constant 0 : index
      %c0_32 = arith.constant 0 : index
      %108 = vector.load %arg6[%c0_31, %c0_32] : memref<8x128xf32, #tpu.memory_space<vmem>>, vector<8x128xf32>
      tpu.vector_store %arg6[%c0_31, %c0_32], %107 {strides = array<i32>} : memref<8x128xf32, #tpu.memory_space<vmem>>, vector<8x128xf32>,
      %cst_33 = arith.constant 0.000000e+00 : f32
      %109 = vector.broadcast %cst_33 : f32 to vector<8x128xf32>
      %c0_34 = arith.constant 0 : index
      %c0_35 = arith.constant 0 : index
      %110 = vector.load %arg7[%c0_34, %c0_35] : memref<8x128xf32, #tpu.memory_space<vmem>>, vector<8x128xf32>
      tpu.vector_store %arg7[%c0_34, %c0_35], %109 {strides = array<i32>} : memref<8x128xf32, #tpu.memory_space<vmem>>, vector<8x128xf32>,
    } else {
    }
    %c0 = arith.constant 0 : index
    %c0_1 = arith.constant 0 : index
    %3 = vector.load %arg5[%c0, %c0_1] : memref<128x512xbf16, #tpu.memory_space<vmem>>, vector<128x512xbf16>
    %c0_2 = arith.constant 0 : index
    %c0_3 = arith.constant 0 : index
    %4 = vector.load %arg6[%c0_2, %c0_3] : memref<8x128xf32, #tpu.memory_space<vmem>>, vector<8x128xf32>
    %c0_4 = arith.constant 0 : index
    %c0_5 = arith.constant 0 : index
    %5 = vector.load %arg7[%c0_4, %c0_5] : memref<8x128xf32, #tpu.memory_space<vmem>>, vector<8x128xf32>
    %c0_i32_6 = arith.constant 0 : i32
    %6 = arith.index_cast %c0_i32_6 : i32 to index
    %c0_7 = arith.constant 0 : index
    %c0_8 = arith.constant 0 : index
    %7 = vector.load %arg2[%6, %c0_7, %c0_8] : memref<4x8x512xbf16, #tpu.memory_space<vmem>>, vector<1x8x512xbf16>
    %8 = vector.shape_cast %7 : vector<1x8x512xbf16> to vector<8x512xbf16>
    %9 = arith.extf %8 : vector<8x512xbf16> to vector<8x512xf32>
    %10 = arith.truncf %4 : vector<8x128xf32> to vector<8x128xbf16>
    %cst = arith.constant dense<0.000000e+00> : vector<8x512xf32>
    %11 = tpu.matmul %10, %3, %cst {dimension_numbers = #tpu.dot_dimension_numbers<[1], [0], [0], [1], [0, 0, 1, 1], [], []>} : vector<8x128xbf16>, vector<128x512xbf16>, vector<8x512xf32> -> vector<8x512xf32>
    %12 = arith.addf %9, %11 : vector<8x512xf32>
    %13 = vector.extract_strided_slice %12 {offsets = [0, 0], sizes = [8, 384], strides = [1, 1]} : vector<8x512xf32> to vector<8x384xf32>
    %14 = arith.negf %13 : vector<8x384xf32>
    %15 = math.exp %14 : vector<8x384xf32>
    %cst_9 = arith.constant 1.000000e+00 : f32
    %16 = vector.broadcast %cst_9 : f32 to vector<8x384xf32>
    %17 = arith.addf %16, %15 : vector<8x384xf32>
    %18 = arith.divf %16, %17 : vector<8x384xf32>
    %19 = vector.extract_strided_slice %18 {offsets = [0, 0], sizes = [8, 128], strides = [1, 1]} : vector<8x384xf32> to vector<8x128xf32>
    %20 = vector.extract_strided_slice %18 {offsets = [0, 128], sizes = [8, 128], strides = [1, 1]} : vector<8x384xf32> to vector<8x128xf32>
    %21 = vector.extract_strided_slice %18 {offsets = [0, 256], sizes = [8, 128], strides = [1, 1]} : vector<8x384xf32> to vector<8x128xf32>
    %22 = vector.extract_strided_slice %12 {offsets = [0, 384], sizes = [8, 128], strides = [1, 1]} : vector<8x512xf32> to vector<8x128xf32>
    %23 = math.tanh %22 : vector<8x128xf32>
    %24 = arith.mulf %20, %5 : vector<8x128xf32>
    %25 = arith.mulf %19, %23 : vector<8x128xf32>
    %26 = arith.addf %24, %25 : vector<8x128xf32>
    %27 = math.tanh %26 : vector<8x128xf32>
    %28 = arith.mulf %21, %27 : vector<8x128xf32>
    %c1_i32 = arith.constant 1 : i32
    %29 = arith.index_cast %c1_i32 : i32 to index
    %c0_10 = arith.constant 0 : index
    %c0_11 = arith.constant 0 : index
    %30 = vector.load %arg2[%29, %c0_10, %c0_11] : memref<4x8x512xbf16, #tpu.memory_space<vmem>>, vector<1x8x512xbf16>
    %31 = vector.shape_cast %30 : vector<1x8x512xbf16> to vector<8x512xbf16>
    %32 = arith.extf %31 : vector<8x512xbf16> to vector<8x512xf32>
    %33 = arith.truncf %28 : vector<8x128xf32> to vector<8x128xbf16>
    %cst_12 = arith.constant dense<0.000000e+00> : vector<8x512xf32>
    %34 = tpu.matmul %33, %3, %cst_12 {dimension_numbers = #tpu.dot_dimension_numbers<[1], [0], [0], [1], [0, 0, 1, 1], [], []>} : vector<8x128xbf16>, vector<128x512xbf16>, vector<8x512xf32> -> vector<8x512xf32>
    %35 = arith.addf %32, %34 : vector<8x512xf32>
    %36 = vector.extract_strided_slice %35 {offsets = [0, 0], sizes = [8, 384], strides = [1, 1]} : vector<8x512xf32> to vector<8x384xf32>
    %37 = arith.negf %36 : vector<8x384xf32>
    %38 = math.exp %37 : vector<8x384xf32>
    %cst_13 = arith.constant 1.000000e+00 : f32
    %39 = vector.broadcast %cst_13 : f32 to vector<8x384xf32>
    %40 = arith.addf %39, %38 : vector<8x384xf32>
    %41 = arith.divf %39, %40 : vector<8x384xf32>
    %42 = vector.extract_strided_slice %41 {offsets = [0, 0], sizes = [8, 128], strides = [1, 1]} : vector<8x384xf32> to vector<8x128xf32>
    %43 = vector.extract_strided_slice %41 {offsets = [0, 128], sizes = [8, 128], strides = [1, 1]} : vector<8x384xf32> to vector<8x128xf32>
    %44 = vector.extract_strided_slice %41 {offsets = [0, 256], sizes = [8, 128], strides = [1, 1]} : vector<8x384xf32> to vector<8x128xf32>
    %45 = vector.extract_strided_slice %35 {offsets = [0, 384], sizes = [8, 128], strides = [1, 1]} : vector<8x512xf32> to vector<8x128xf32>
    %46 = math.tanh %45 : vector<8x128xf32>
    %47 = arith.mulf %43, %26 : vector<8x128xf32>
    %48 = arith.mulf %42, %46 : vector<8x128xf32>
    %49 = arith.addf %47, %48 : vector<8x128xf32>
    %50 = math.tanh %49 : vector<8x128xf32>
    %51 = arith.mulf %44, %50 : vector<8x128xf32>
    %c2_i32 = arith.constant 2 : i32
    %52 = arith.index_cast %c2_i32 : i32 to index
    %c0_14 = arith.constant 0 : index
    %c0_15 = arith.constant 0 : index
    %53 = vector.load %arg2[%52, %c0_14, %c0_15] : memref<4x8x512xbf16, #tpu.memory_space<vmem>>, vector<1x8x512xbf16>
    %54 = vector.shape_cast %53 : vector<1x8x512xbf16> to vector<8x512xbf16>
    %55 = arith.extf %54 : vector<8x512xbf16> to vector<8x512xf32>
    %56 = arith.truncf %51 : vector<8x128xf32> to vector<8x128xbf16>
    %cst_16 = arith.constant dense<0.000000e+00> : vector<8x512xf32>
    %57 = tpu.matmul %56, %3, %cst_16 {dimension_numbers = #tpu.dot_dimension_numbers<[1], [0], [0], [1], [0, 0, 1, 1], [], []>} : vector<8x128xbf16>, vector<128x512xbf16>, vector<8x512xf32> -> vector<8x512xf32>
    %58 = arith.addf %55, %57 : vector<8x512xf32>
    %59 = vector.extract_strided_slice %58 {offsets = [0, 0], sizes = [8, 384], strides = [1, 1]} : vector<8x512xf32> to vector<8x384xf32>
    %60 = arith.negf %59 : vector<8x384xf32>
    %61 = math.exp %60 : vector<8x384xf32>
    %cst_17 = arith.constant 1.000000e+00 : f32
    %62 = vector.broadcast %cst_17 : f32 to vector<8x384xf32>
    %63 = arith.addf %62, %61 : vector<8x384xf32>
    %64 = arith.divf %62, %63 : vector<8x384xf32>
    %65 = vector.extract_strided_slice %64 {offsets = [0, 0], sizes = [8, 128], strides = [1, 1]} : vector<8x384xf32> to vector<8x128xf32>
    %66 = vector.extract_strided_slice %64 {offsets = [0, 128], sizes = [8, 128], strides = [1, 1]} : vector<8x384xf32> to vector<8x128xf32>
    %67 = vector.extract_strided_slice %64 {offsets = [0, 256], sizes = [8, 128], strides = [1, 1]} : vector<8x384xf32> to vector<8x128xf32>
    %68 = vector.extract_strided_slice %58 {offsets = [0, 384], sizes = [8, 128], strides = [1, 1]} : vector<8x512xf32> to vector<8x128xf32>
    %69 = math.tanh %68 : vector<8x128xf32>
    %70 = arith.mulf %66, %49 : vector<8x128xf32>
    %71 = arith.mulf %65, %69 : vector<8x128xf32>
    %72 = arith.addf %70, %71 : vector<8x128xf32>
    %73 = math.tanh %72 : vector<8x128xf32>
    %74 = arith.mulf %67, %73 : vector<8x128xf32>
    %c3_i32 = arith.constant 3 : i32
    %75 = arith.index_cast %c3_i32 : i32 to index
    %c0_18 = arith.constant 0 : index
    %c0_19 = arith.constant 0 : index
    %76 = vector.load %arg2[%75, %c0_18, %c0_19] : memref<4x8x512xbf16, #tpu.memory_space<vmem>>, vector<1x8x512xbf16>
    %77 = vector.shape_cast %76 : vector<1x8x512xbf16> to vector<8x512xbf16>
    %78 = arith.extf %77 : vector<8x512xbf16> to vector<8x512xf32>
    %79 = arith.truncf %74 : vector<8x128xf32> to vector<8x128xbf16>
    %cst_20 = arith.constant dense<0.000000e+00> : vector<8x512xf32>
    %80 = tpu.matmul %79, %3, %cst_20 {dimension_numbers = #tpu.dot_dimension_numbers<[1], [0], [0], [1], [0, 0, 1, 1], [], []>} : vector<8x128xbf16>, vector<128x512xbf16>, vector<8x512xf32> -> vector<8x512xf32>
    %81 = arith.addf %78, %80 : vector<8x512xf32>
    %82 = vector.extract_strided_slice %81 {offsets = [0, 0], sizes = [8, 384], strides = [1, 1]} : vector<8x512xf32> to vector<8x384xf32>
    %83 = arith.negf %82 : vector<8x384xf32>
    %84 = math.exp %83 : vector<8x384xf32>
    %cst_21 = arith.constant 1.000000e+00 : f32
    %85 = vector.broadcast %cst_21 : f32 to vector<8x384xf32>
    %86 = arith.addf %85, %84 : vector<8x384xf32>
    %87 = arith.divf %85, %86 : vector<8x384xf32>
    %88 = vector.extract_strided_slice %87 {offsets = [0, 0], sizes = [8, 128], strides = [1, 1]} : vector<8x384xf32> to vector<8x128xf32>
    %89 = vector.extract_strided_slice %87 {offsets = [0, 128], sizes = [8, 128], strides = [1, 1]} : vector<8x384xf32> to vector<8x128xf32>
    %90 = vector.extract_strided_slice %87 {offsets = [0, 256], sizes = [8, 128], strides = [1, 1]} : vector<8x384xf32> to vector<8x128xf32>
    %91 = vector.extract_strided_slice %81 {offsets = [0, 384], sizes = [8, 128], strides = [1, 1]} : vector<8x512xf32> to vector<8x128xf32>
    %92 = math.tanh %91 : vector<8x128xf32>
    %93 = arith.mulf %89, %72 : vector<8x128xf32>
    %94 = arith.mulf %88, %92 : vector<8x128xf32>
    %95 = arith.addf %93, %94 : vector<8x128xf32>
    %96 = math.tanh %95 : vector<8x128xf32>
    %97 = arith.mulf %90, %96 : vector<8x128xf32>
    %c4_i32 = arith.constant 4 : i32
    %c0_22 = arith.constant 0 : index
    %c0_23 = arith.constant 0 : index
    %98 = vector.load %arg6[%c0_22, %c0_23] : memref<8x128xf32, #tpu.memory_space<vmem>>, vector<8x128xf32>
    tpu.vector_store %arg6[%c0_22, %c0_23], %97 {strides = array<i32>} : memref<8x128xf32, #tpu.memory_space<vmem>>, vector<8x128xf32>,
    %c0_24 = arith.constant 0 : index
    %c0_25 = arith.constant 0 : index
    %99 = vector.load %arg7[%c0_24, %c0_25] : memref<8x128xf32, #tpu.memory_space<vmem>>, vector<8x128xf32>
    tpu.vector_store %arg7[%c0_24, %c0_25], %95 {strides = array<i32>} : memref<8x128xf32, #tpu.memory_space<vmem>>, vector<8x128xf32>,
    %c1_i32_26 = arith.constant 1 : i32
    %100 = arith.cmpi eq, %arg1, %c1_i32_26 : i32
    %101 = arith.extui %100 : i1 to i32
    %c0_i32_27 = arith.constant 0 : i32
    %102 = arith.cmpi ne, %101, %c0_i32_27 : i32
    scf.if %102 {
      %c0_28 = arith.constant 0 : index
      %c0_29 = arith.constant 0 : index
      %103 = vector.load %arg6[%c0_28, %c0_29] : memref<8x128xf32, #tpu.memory_space<vmem>>, vector<8x128xf32>
      %c0_30 = arith.constant 0 : index
      %c0_31 = arith.constant 0 : index
      %104 = vector.load %arg4[%c0_30, %c0_31] : memref<8x128xf32, #tpu.memory_space<vmem>>, vector<8x128xf32>
      tpu.vector_store %arg4[%c0_30, %c0_31], %103 {strides = array<i32>} : memref<8x128xf32, #tpu.memory_space<vmem>>, vector<8x128xf32>,
    } else {
    }
    return
  }
  func.func @transform_0(%arg0: i32, %arg1: i32) -> (i32, i32, i32) {
    %c0_i32 = arith.constant 0 : i32
    %c0_i32_0 = arith.constant 0 : i32
    return %arg1, %arg0, %c0_i32 : i32, i32, i32
  }
  func.func @transform_2(%arg0: i32, %arg1: i32) -> (i32, i32) {
    %c0_i32 = arith.constant 0 : i32
    %c0_i32_0 = arith.constant 0 : i32
    return %arg0, %c0_i32 : i32, i32
  }
}

</mosaic_0001>

<llo_original>
// kernel: tpu_custom_call.1
$region0: #{tpu_custom_call.1}
  #allocation0 [shape = 'u32[]', space=smem, size = 0x4, offset = 0x4, fixed_abs, tag = 'smem constant byte address 0x4 - core index']
  #allocation1 [shape = 'u32[144,128]{1,0:T(1,128)}', space=vmem, size = 0x12000, scoped, tag = 'internal scratch']
  #allocation2 [shape = 'bf16[128,512]{1,0:T(16,128)(2,1)}', space=vmem, size = 0x20000, scoped, tag = 'scratch operand']
  #allocation3 [shape = 'f32[8,128]{1,0:T(8,128)}', space=vmem, size = 0x1000, scoped, tag = 'scratch operand']
  #allocation4 [shape = 'f32[8,128]{1,0:T(8,128)}', space=vmem, size = 0x1000, scoped, tag = 'scratch operand']
  #allocation5 [shape = 's32[1]{0}', space=sflag, size = 0x4, scoped, tag = 'scratch operand']
  #allocation10 [shape = 's32[]', space=sflag, size = 0x4, offset = 0, fixed_abs, tag = 'sflag constant byte address 0x0 - dummy sync flag']
  %s0 = inlined_call_operand.hbm [shape: bf16[8,8,512], index: 0, kind: input, shape index: {}]
  %s1 = inlined_call_operand.hbm [shape: bf16[128,512], index: 1, kind: input, shape index: {}]
  %s2 = inlined_call_operand.hbm [shape: f32[8,128], index: 2, kind: output, shape index: {}]
  %s3 = sld [smem:[#allocation0]]
  $region49: #{tpu_custom_call.1} parent=0
    _
  %s5 = ssub.s32 1, %s3
  %s6 = scalar_select 0, %s5, %s3
  $region1: #{tpu_custom_call.1} parent=0
    #allocation6 [shape = 'u8[65536]{0}', space=vmem, size = 0x10000, scoped, tag = 'input window, operand 0']
    #allocation7 [shape = 's32[2]{0}', space=sflag, size = 0x8, scoped, tag = 'scoped memory for tpu_custom_call.1']
    #allocation8 [shape = 's32[2]{0}', space=sflag, size = 0x8, scoped, tag = 'scoped memory for tpu_custom_call.1']
    #allocation9 [shape = 'u8[4096]{0}', space=vmem, size = 0x1000, scoped, tag = 'output window, operand 0, single buffered']
    %7 = vsyncpa [#allocation7], 0
    %s8 = scalar_lea.sflag [#allocation7], 1
    %9 = vsyncpa %s8, 0
    %10 = vsyncpa [#allocation8], 0
    loop: start=0, step=1, limit=4
    $region2: #{tpu_custom_call.1} parent=1 // loop_pre_header
      _
    $region3: #{tpu_custom_call.1} parent=1 // loop_header
      %s12 = sphi 0, %s16
      %p13 = scmp.ge.s32.totalorder %s12, 4
      %s19 = sphi 0, %s31
      %s20 = sphi 0, %s27
      %s21 = sphi 0, %s19
      %s22 = sphi 0, %s20
      %s23 = sphi 0, %s21
      %s24 = sphi 0, %s22
      %s36 = sphi 0, %s38
      %s39 = sphi 0, %s36
      %s40 = sphi 0, %s39
      %s56 = sphi 0, %s40
      %s62 = sphi 0, %s64
      %s65 = sphi 0, %s62
      %s66 = sphi 0, %s65
      %s82 = sphi 0, %s66
    $region4: #{tpu_custom_call.1} parent=1 // loop_header_branch
      %15 = sbr.rel (%p13) target = $region8
    $region5: #{tpu_custom_call.1} parent=1 // loop_body
      %s17 = ssub.s32 %s12, 1
      %s18 = ssub.s32 %s12, 2
      %s25 = sadd.s32 1, %s20
      %p26 = scmp.ge.s32.totalorder %s25, 2
      %s27 = scalar_select %p26, 0, %s25
      %s28 = sadd.s32 1, %s19
      %s29 = scalar_select %p26, %s28, %s19
      %p30 = scmp.ge.s32.totalorder %s29, 1
      %s31 = scalar_select %p30, 0, %s29
      %s32 = ssub.s32 %s20, %s27
      %s33 = ssub.s32 %s19, %s31
      %s34 = sor.u32 %s32, %s33
      %p35 = scmp.eq.s32.totalorder %s34, 0
      %s37 = sadd.s32 %s36, 1
      %s38 = scalar_select %p35, %s36, %s37
      %p41 = pneg %p35
      %p42 = scmp.eq.s32.totalorder %s12, 1
      %p43 = por %p41, %p42
      %p44 = scmp.ne.s32.totalorder %s36, %s39
      %p45 = scmp.eq.s32.totalorder %s12, 0
      %p46 = por %p44, %p45
      %p47 = scmp.ne.s32.totalorder %s36, %s39
      %p48 = scmp.eq.s32.totalorder %s17, 1
      %p49 = por %p47, %p48
      %p50 = scmp.ne.s32.totalorder %s39, %s40
      %p51 = scmp.eq.s32.totalorder %s17, 0
      %p52 = por %p50, %p51
      %p53 = scmp.ne.s32.totalorder %s39, %s40
      %p54 = scmp.eq.s32.totalorder %s18, 1
      %p55 = por %p53, %p54
      %p57 = scmp.ne.s32.totalorder %s40, %s56
      %p58 = scmp.eq.s32.totalorder %s18, 0
      %p59 = por %p57, %p58
      %s60 = ssub.s32 %s19, %s31
      %p61 = scmp.eq.s32.totalorder %s60, 0
      %s63 = sadd.s32 %s62, 1
      %s64 = scalar_select %p61, %s62, %s63
      %p67 = pneg %p61
      %p68 = scmp.eq.s32.totalorder %s12, 1
      %p69 = por %p67, %p68
      %p70 = scmp.ne.s32.totalorder %s62, %s65
      %p71 = scmp.eq.s32.totalorder %s12, 0
      %p72 = por %p70, %p71
      %p73 = scmp.ne.s32.totalorder %s62, %s65
      %p74 = scmp.eq.s32.totalorder %s17, 1
      %p75 = por %p73, %p74
      %p76 = scmp.ne.s32.totalorder %s65, %s66
      %p77 = scmp.eq.s32.totalorder %s17, 0
      %p78 = por %p76, %p77
      %p79 = scmp.ne.s32.totalorder %s65, %s66
      %p80 = scmp.eq.s32.totalorder %s18, 1
      %p81 = por %p79, %p80
      %p83 = scmp.ne.s32.totalorder %s66, %s82
      %p84 = scmp.eq.s32.totalorder %s18, 0
      %p85 = por %p83, %p84
      %p86 = scmp.le.s32.totalorder 1, %s12
      %p87 = scmp.lt.s32.totalorder %s12, 3
      %p88 = pnand %p86, %p87
      %p89 = pneg %p88
      // Predicated region
      $region9: #{tpu_custom_call.1} parent=5 // pred_check
        _
      $region10: #{tpu_custom_call.1} parent=5 // pred_check_branch
        %91 = sbr.rel (%p88) target = $region12
      $region11: #{tpu_custom_call.1} parent=5 // pred_region
        %s92 = ssub.s32 %s12, 1
      $region12: #{tpu_custom_call.1} parent=5 // pred_fallthru
        _
      %p93 = scmp.lt.s32.totalorder %s12, 2
      // Predicated region
      $region13: #{tpu_custom_call.1} parent=5 // pred_check
        %p94 = pneg %p93
      $region14: #{tpu_custom_call.1} parent=5 // pred_check_branch
        %96 = sbr.rel (%p94) target = $region16
      $region15: #{tpu_custom_call.1} parent=5 // pred_region
        // Predicated region
        $region17: #{tpu_custom_call.1} parent=15 // pred_check
          %p97 = pneg %p46
        $region18: #{tpu_custom_call.1} parent=15 // pred_check_branch
          %99 = sbr.rel (%p97) target = $region20
        $region19: #{tpu_custom_call.1} parent=15 // pred_region
          %s100 = sand.u32 %s36, 1
          %s101 = scalar_lea.sflag [#allocation7], %s100
          %s102 = sand.u32 %s36, 1
          %s103 = smul.addr %s102, 64
          %s104 = scalar_lea.vmem [#allocation6], %s103
          %s105 = smul.u32 4, %s20
          %s107 = ssub.s32 1024, 1024
          %108 = vsyncadd %s101, %s107
          %s109 = smul.addr %s19, 4
          %s110 = smul.addr %s105, 4
          %s111 = sadd.s32 %s109, %s110
          %s112 = smul.addr %s111, 64
          %s113 = scalar_lea.hbm %s0, %s112
          %s114 = sshll.u32 %s104, 4
          %s115 = int_to_ptr.vmem [resolvable:$true] %s114
          %120 = dma.hbm_to_vmem [thread:$0]  %s113, 1024, %s115, %s101, 256, 256, 16
        $region20: #{tpu_custom_call.1} parent=15 // pred_fallthru
          _
      $region16: #{tpu_custom_call.1} parent=5 // pred_fallthru
        _
      %p121 = scmp.le.s32.totalorder 1, %s12
      %p122 = scmp.lt.s32.totalorder %s12, 3
      %p123 = pnand %p121, %p122
      %p124 = pneg %p123
      // Predicated region
      $region21: #{tpu_custom_call.1} parent=5 // pred_check
        _
      $region22: #{tpu_custom_call.1} parent=5 // pred_check_branch
        %126 = sbr.rel (%p123) target = $region24
      $region23: #{tpu_custom_call.1} parent=5 // pred_region
        %s127 = ssub.s32 %s12, 1
        %s128 = sand.u32 %s39, 1
        %s129 = scalar_lea.sflag [#allocation7], %s128
        %s130 = sand.u32 %s39, 1
        %s131 = smul.addr %s130, 64
        %s132 = scalar_lea.vmem [#allocation6], %s131
        // Predicated region
        $region25: #{tpu_custom_call.1} parent=23 // pred_check
          %p133 = pneg %p52
        $region26: #{tpu_custom_call.1} parent=23 // pred_check_branch
          %135 = sbr.rel (%p133) target = $region28
        $region27: #{tpu_custom_call.1} parent=23 // pred_region
          %136 = dma.done %s129, 1024
        $region28: #{tpu_custom_call.1} parent=23 // pred_fallthru
          _
        %s137 = sand.u32 %s39, 1
        %s138 = scalar_lea.sflag [#allocation7], %s137
        %s139 = sand.u32 %s39, 1
        %s140 = smul.addr %s139, 64
        %s141 = scalar_lea.vmem [#allocation6], %s140
        %p142 = pneg %p52
        %p143 = pneg %p49
        %p144 = pneg %p78
        %p145 = pneg %p75
        %s146 = smul.u32 4, %s22
        %p148 = scmp.eq.s32.totalorder %s22, 0
        // Predicated region
        $region29: #{tpu_custom_call.1} parent=23 // pred_check
          %p149 = pneg %p148
        $region30: #{tpu_custom_call.1} parent=23 // pred_check_branch
          %151 = sbr.rel (%p149) target = $region32
        $region31: #{tpu_custom_call.1} parent=23 // pred_region
          #allocation11 [shape = 'u32[9]{0}', space=smem, size = 0x24, scoped, tag = 'DMA stride descriptor']
          %s153 = sshll.u32 1, 14
          %s154 = sxor.u32 4294967295, %s153
          %s156 = sld [smem:[#allocation0]]
          %s157 = sadd.s32 2, %s156
          %s159 = sshll.u32 7, 26
          %s160 = sxor.u32 4294967295, %s159
          %s161 = sand.u32 0, %s160
          %s162 = sshll.u32 %s157, 26
          %s163 = sor.u32 %s161, %s162
          %s164 = sshll.u32 [#allocation2], 4
          %s165 = int_to_ptr.vmem [resolvable:$true] %s164
          %168 = sst [smem:[#allocation11]] 512
          %s169 = scalar_lea.smem [#allocation11], 1
          %170 = sst [smem:[%s169]] 512
          %s171 = scalar_lea.smem [#allocation11], 2
          %172 = sst [smem:[%s171]] 4
          %s173 = scalar_lea.smem [#allocation11], 3
          %174 = sst [smem:[%s173]] 64
          %s175 = scalar_lea.smem [#allocation11], 4
          %176 = sst [smem:[%s175]] 128
          %s177 = scalar_lea.smem [#allocation11], 5
          %178 = sst [smem:[%s177]] 2
          %s179 = scalar_lea.smem [#allocation11], 6
          %180 = sst [smem:[%s179]] 256
          %s181 = scalar_lea.smem [#allocation11], 7
          %182 = sst [smem:[%s181]] 64
          %s183 = scalar_lea.smem [#allocation11], 8
          %184 = sst [smem:[%s183]] 4
          %186 = dma.general %s1, 4096, %s165, [#allocation5], [#allocation10], [#allocation11], %s163, 0
          %s187 = smul.u32 4, 16
          %s188 = smul.u32 %s187, 4
          %s189 = sshll.u32 %s188, 4
          %190 = dma.done [#allocation5], %s189
          %191 = vst [vmem:[#allocation3] sm:$0xff] 0.0
          %192 = vst [vmem:[#allocation4] sm:$0xff] 0.0
        $region32: #{tpu_custom_call.1} parent=23 // pred_fallthru
          _
        %v193 = vld [vmem:[#allocation2] sm:$0xff]
        %v194 = vld [vmem:[#allocation2 + $0x8] sm:$0xff]
        %v195 = vld [vmem:[#allocation2 + $0x10] sm:$0xff]
        %v196 = vld [vmem:[#allocation2 + $0x18] sm:$0xff]
        %v197 = vld [vmem:[#allocation2 + $0x20] sm:$0xff]
        %v198 = vld [vmem:[#allocation2 + $0x28] sm:$0xff]
        %v199 = vld [vmem:[#allocation2 + $0x30] sm:$0xff]
        %v200 = vld [vmem:[#allocation2 + $0x38] sm:$0xff]
        %v201 = vld [vmem:[#allocation2 + $0x40] sm:$0xff]
        %v202 = vld [vmem:[#allocation2 + $0x48] sm:$0xff]
        %v203 = vld [vmem:[#allocation2 + $0x50] sm:$0xff]
        %v204 = vld [vmem:[#allocation2 + $0x58] sm:$0xff]
        %v205 = vld [vmem:[#allocation2 + $0x60] sm:$0xff]
        %v206 = vld [vmem:[#allocation2 + $0x68] sm:$0xff]
        %v207 = vld [vmem:[#allocation2 + $0x70] sm:$0xff]
        %v208 = vld [vmem:[#allocation2 + $0x78] sm:$0xff]
        %v209 = vld [vmem:[#allocation2 + $0x80] sm:$0xff]
        %v210 = vld [vmem:[#allocation2 + $0x88] sm:$0xff]
        %v211 = vld [vmem:[#allocation2 + $0x90] sm:$0xff]
        %v212 = vld [vmem:[#allocation2 + $0x98] sm:$0xff]
        %v213 = vld [vmem:[#allocation2 + $0xa0] sm:$0xff]
        %v214 = vld [vmem:[#allocation2 + $0xa8] sm:$0xff]
        %v215 = vld [vmem:[#allocation2 + $0xb0] sm:$0xff]
        %v216 = vld [vmem:[#allocation2 + $0xb8] sm:$0xff]
        %v217 = vld [vmem:[#allocation2 + $0xc0] sm:$0xff]
        %v218 = vld [vmem:[#allocation2 + $0xc8] sm:$0xff]
        %v219 = vld [vmem:[#allocation2 + $0xd0] sm:$0xff]
        %v220 = vld [vmem:[#allocation2 + $0xd8] sm:$0xff]
        %v221 = vld [vmem:[#allocation2 + $0xe0] sm:$0xff]
        %v222 = vld [vmem:[#allocation2 + $0xe8] sm:$0xff]
        %v223 = vld [vmem:[#allocation2 + $0xf0] sm:$0xff]
        %v224 = vld [vmem:[#allocation2 + $0xf8] sm:$0xff]
        %v225 = vld [vmem:[#allocation3] sm:$0xff]
        %v226 = vld [vmem:[#allocation4] sm:$0xff]
        %v227 = vld [vmem:[%s132] sm:$0xff]
        %v228 = vld [vmem:[%s132 + $0x8] sm:$0xff]
        %v229 = vunpack.c.l.bf16 %v227
        %v230 = vunpack.c.h.bf16 %v227
        %v231 = vunpack.c.l.bf16 %v228
        %v232 = vunpack.c.h.bf16 %v228
        %v233 = vpack.c.bf16 %v225, %v225
        %234 = vmatprep.subr.bf16.mxu0 %v194
        %235 = vmatpush1.bf16.msra.mxu0 %v193
        %236 = vmatprep.subr.bf16.mxu0 %v198
        %237 = vmatpush1.bf16.msra.mxu0 %v197
        %238 = vmatprep.subr.bf16.mxu0 %v202
        %239 = vmatpush1.bf16.msra.mxu0 %v201
        %240 = vmatprep.subr.bf16.mxu0 %v206
        %241 = vmatpush1.bf16.msra.mxu0 %v205
        %242 = vmatprep.subr.bf16.mxu0 %v210
        %243 = vmatpush1.bf16.msra.mxu0 %v209
        %244 = vmatprep.subr.bf16.mxu0 %v214
        %245 = vmatpush1.bf16.msra.mxu0 %v213
        %246 = vmatprep.subr.bf16.mxu0 %v218
        %247 = vmatpush1.bf16.msra.mxu0 %v217
        %248 = vmatprep.subr.bf16.mxu0 %v222
        %249 = vmatpush1.bf16.msra.mxu0 %v221
        %250 = vmatprep.subr.bf16.mxu0 0
        %251 = vmatpush1.bf16.msra.mxu0 0
        %252 = vmatprep.subr.bf16.mxu0 0
        %253 = vmatpush1.bf16.msra.mxu0 0
        %254 = vmatprep.subr.bf16.mxu0 0
        %255 = vmatpush1.bf16.msra.mxu0 0
        %256 = vmatprep.subr.bf16.mxu0 0
        %257 = vmatpush1.bf16.msra.mxu0 0
        %258 = vmatprep.subr.bf16.mxu0 0
        %259 = vmatpush1.bf16.msra.mxu0 0
        %260 = vmatprep.subr.bf16.mxu0 0
        %261 = vmatpush1.bf16.msra.mxu0 0
        %262 = vmatprep.subr.bf16.mxu0 0
        %263 = vmatpush1.bf16.msra.mxu0 0
        %264 = vmatprep.subr.bf16.mxu0 0
        %265 = vmatpush1.bf16.msra.mxu0 0
        %266 = vmatprep.mubr.bf16.mxu0 0
        %267 = vmatmul.mubr.bf16.gmra.mrb[0].mxu0 %v233
        %v268 = vpop.f32.mrb[0].mxu0
        %v269 = vadd.f32 0.0, %v268
        %v270 = vpop.f32.mrb[0].mxu0
        %v271 = vadd.f32 0.0, %v270
        %v272 = vpop.f32.mrb[0].mxu0
        %v273 = vpop.f32.mrb[0].mxu0
        %274 = vdwg.mxu0
        %275 = vmatprep.subr.bf16.mxu0 %v196
        %276 = vmatpush1.bf16.msra.mxu0 %v195
        %277 = vmatprep.subr.bf16.mxu0 %v200
        %278 = vmatpush1.bf16.msra.mxu0 %v199
        %279 = vmatprep.subr.bf16.mxu0 %v204
        %280 = vmatpush1.bf16.msra.mxu0 %v203
        %281 = vmatprep.subr.bf16.mxu0 %v208
        %282 = vmatpush1.bf16.msra.mxu0 %v207
        %283 = vmatprep.subr.bf16.mxu0 %v212
        %284 = vmatpush1.bf16.msra.mxu0 %v211
        %285 = vmatprep.subr.bf16.mxu0 %v216
        %286 = vmatpush1.bf16.msra.mxu0 %v215
        %287 = vmatprep.subr.bf16.mxu0 %v220
        %288 = vmatpush1.bf16.msra.mxu0 %v219
        %289 = vmatprep.subr.bf16.mxu0 %v224
        %290 = vmatpush1.bf16.msra.mxu0 %v223
        %291 = vmatprep.subr.bf16.mxu0 0
        %292 = vmatpush1.bf16.msra.mxu0 0
        %293 = vmatprep.subr.bf16.mxu0 0
        %294 = vmatpush1.bf16.msra.mxu0 0
        %295 = vmatprep.subr.bf16.mxu0 0
        %296 = vmatpush1.bf16.msra.mxu0 0
        %297 = vmatprep.subr.bf16.mxu0 0
        %298 = vmatpush1.bf16.msra.mxu0 0
        %299 = vmatprep.subr.bf16.mxu0 0
        %300 = vmatpush1.bf16.msra.mxu0 0
        %301 = vmatprep.subr.bf16.mxu0 0
        %302 = vmatpush1.bf16.msra.mxu0 0
        %303 = vmatprep.subr.bf16.mxu0 0
        %304 = vmatpush1.bf16.msra.mxu0 0
        %305 = vmatprep.subr.bf16.mxu0 0
        %306 = vmatpush1.bf16.msra.mxu0 0
        %307 = vmatprep.mubr.bf16.mxu0 0
        %308 = vmatmul.mubr.bf16.gmra.mrb[0].mxu0 %v233
        %v309 = vpop.f32.mrb[0].mxu0
        %v310 = vadd.f32 0.0, %v309
        %v311 = vpop.f32.mrb[0].mxu0
        %v312 = vadd.f32 0.0, %v311
        %v313 = vpop.f32.mrb[0].mxu0
        %v314 = vpop.f32.mrb[0].mxu0
        %315 = vdwg.mxu0
        %v316 = vadd.f32 %v229, %v269
        %v317 = vadd.f32 %v230, %v271
        %v318 = vadd.f32 %v231, %v310
        %v319 = vadd.f32 %v232, %v312
        %v320 = vxor.u32 %v316, 2147483648
        %v321 = vxor.u32 %v317, 2147483648
        %v322 = vxor.u32 %v318, 2147483648
        %v323 = vmul.f32 %v320, 1.442695
        %v324 = vpow.pop %v323
        %v325 = vmul.f32 %v321, 1.442695
        %v326 = vpow.pop %v325
        %v327 = vmul.f32 %v322, 1.442695
        %v328 = vpow.pop %v327
        %v329 = vadd.f32 %v324, 1.0
        %v330 = vadd.f32 %v326, 1.0
        %v331 = vadd.f32 %v328, 1.0
        %v332 = vrcp.pop %v329
        %v333 = vmul.f32 1.0, %v332
        %v334 = vrcp.pop %v330
        %v335 = vmul.f32 1.0, %v334
        %v336 = vrcp.pop %v331
        %v337 = vmul.f32 1.0, %v336
        %v338 = vtanh.pop %v319
        %v339 = vmul.f32 %v335, %v226
        %v340 = vmul.f32 %v333, %v338
        %v341 = vadd.f32 %v339, %v340
        %v342 = vtanh.pop %v341
        %v343 = vmul.f32 %v337, %v342
        %s344 = scalar_lea.vmem %s132, 16 [#allocation6]
        %v345 = vld [vmem:[%s344] sm:$0xff]
        %v346 = vld [vmem:[%s344 + $0x8] sm:$0xff]
        %v347 = vunpack.c.l.bf16 %v345
        %v348 = vunpack.c.h.bf16 %v345
        %v349 = vunpack.c.l.bf16 %v346
        %v350 = vunpack.c.h.bf16 %v346
        %v351 = vpack.c.bf16 %v343, %v343
        %352 = vmatprep.subr.bf16.mxu0 %v194
        %353 = vmatpush1.bf16.msra.mxu0 %v193
        %354 = vmatprep.subr.bf16.mxu0 %v198
        %355 = vmatpush1.bf16.msra.mxu0 %v197
        %356 = vmatprep.subr.bf16.mxu0 %v202
        %357 = vmatpush1.bf16.msra.mxu0 %v201
        %358 = vmatprep.subr.bf16.mxu0 %v206
        %359 = vmatpush1.bf16.msra.mxu0 %v205
        %360 = vmatprep.subr.bf16.mxu0 %v210
        %361 = vmatpush1.bf16.msra.mxu0 %v209
        %362 = vmatprep.subr.bf16.mxu0 %v214
        %363 = vmatpush1.bf16.msra.mxu0 %v213
        %364 = vmatprep.subr.bf16.mxu0 %v218
        %365 = vmatpush1.bf16.msra.mxu0 %v217
        %366 = vmatprep.subr.bf16.mxu0 %v222
        %367 = vmatpush1.bf16.msra.mxu0 %v221
        %368 = vmatprep.subr.bf16.mxu0 0
        %369 = vmatpush1.bf16.msra.mxu0 0
        %370 = vmatprep.subr.bf16.mxu0 0
        %371 = vmatpush1.bf16.msra.mxu0 0
        %372 = vmatprep.subr.bf16.mxu0 0
        %373 = vmatpush1.bf16.msra.mxu0 0
        %374 = vmatprep.subr.bf16.mxu0 0
        %375 = vmatpush1.bf16.msra.mxu0 0
        %376 = vmatprep.subr.bf16.mxu0 0
        %377 = vmatpush1.bf16.msra.mxu0 0
        %378 = vmatprep.subr.bf16.mxu0 0
        %379 = vmatpush1.bf16.msra.mxu0 0
        %380 = vmatprep.subr.bf16.mxu0 0
        %381 = vmatpush1.bf16.msra.mxu0 0
        %382 = vmatprep.subr.bf16.mxu0 0
        %383 = vmatpush1.bf16.msra.mxu0 0
        %384 = vmatprep.mubr.bf16.mxu0 0
        %385 = vmatmul.mubr.bf16.gmra.mrb[0].mxu0 %v351
        %v386 = vpop.f32.mrb[0].mxu0
        %v387 = vadd.f32 0.0, %v386
        %v388 = vpop.f32.mrb[0].mxu0
        %v389 = vadd.f32 0.0, %v388
        %v390 = vpop.f32.mrb[0].mxu0
        %v391 = vpop.f32.mrb[0].mxu0
        %392 = vdwg.mxu0
        %393 = vmatprep.subr.bf16.mxu0 %v196
        %394 = vmatpush1.bf16.msra.mxu0 %v195
        %395 = vmatprep.subr.bf16.mxu0 %v200
        %396 = vmatpush1.bf16.msra.mxu0 %v199
        %397 = vmatprep.subr.bf16.mxu0 %v204
        %398 = vmatpush1.bf16.msra.mxu0 %v203
        %399 = vmatprep.subr.bf16.mxu0 %v208
        %400 = vmatpush1.bf16.msra.mxu0 %v207
        %401 = vmatprep.subr.bf16.mxu0 %v212
        %402 = vmatpush1.bf16.msra.mxu0 %v211
        %403 = vmatprep.subr.bf16.mxu0 %v216
        %404 = vmatpush1.bf16.msra.mxu0 %v215
        %405 = vmatprep.subr.bf16.mxu0 %v220
        %406 = vmatpush1.bf16.msra.mxu0 %v219
        %407 = vmatprep.subr.bf16.mxu0 %v224
        %408 = vmatpush1.bf16.msra.mxu0 %v223
        %409 = vmatprep.subr.bf16.mxu0 0
        %410 = vmatpush1.bf16.msra.mxu0 0
        %411 = vmatprep.subr.bf16.mxu0 0
        %412 = vmatpush1.bf16.msra.mxu0 0
        %413 = vmatprep.subr.bf16.mxu0 0
        %414 = vmatpush1.bf16.msra.mxu0 0
        %415 = vmatprep.subr.bf16.mxu0 0
        %416 = vmatpush1.bf16.msra.mxu0 0
        %417 = vmatprep.subr.bf16.mxu0 0
        %418 = vmatpush1.bf16.msra.mxu0 0
        %419 = vmatprep.subr.bf16.mxu0 0
        %420 = vmatpush1.bf16.msra.mxu0 0
        %421 = vmatprep.subr.bf16.mxu0 0
        %422 = vmatpush1.bf16.msra.mxu0 0
        %423 = vmatprep.subr.bf16.mxu0 0
        %424 = vmatpush1.bf16.msra.mxu0 0
        %425 = vmatprep.mubr.bf16.mxu0 0
        %426 = vmatmul.mubr.bf16.gmra.mrb[0].mxu0 %v351
        %v427 = vpop.f32.mrb[0].mxu0
        %v428 = vadd.f32 0.0, %v427
        %v429 = vpop.f32.mrb[0].mxu0
        %v430 = vadd.f32 0.0, %v429
        %v431 = vpop.f32.mrb[0].mxu0
        %v432 = vpop.f32.mrb[0].mxu0
        %433 = vdwg.mxu0
        %v434 = vadd.f32 %v347, %v387
        %v435 = vadd.f32 %v348, %v389
        %v436 = vadd.f32 %v349, %v428
        %v437 = vadd.f32 %v350, %v430
        %v438 = vxor.u32 %v434, 2147483648
        %v439 = vxor.u32 %v435, 2147483648
        %v440 = vxor.u32 %v436, 2147483648
        %v441 = vmul.f32 %v438, 1.442695
        %v442 = vpow.pop %v441
        %v443 = vmul.f32 %v439, 1.442695
        %v444 = vpow.pop %v443
        %v445 = vmul.f32 %v440, 1.442695
        %v446 = vpow.pop %v445
        %v447 = vadd.f32 %v442, 1.0
        %v448 = vadd.f32 %v444, 1.0
        %v449 = vadd.f32 %v446, 1.0
        %v450 = vrcp.pop %v447
        %v451 = vmul.f32 1.0, %v450
        %v452 = vrcp.pop %v448
        %v453 = vmul.f32 1.0, %v452
        %v454 = vrcp.pop %v449
        %v455 = vmul.f32 1.0, %v454
        %v456 = vtanh.pop %v437
        %v457 = vmul.f32 %v453, %v341
        %v458 = vmul.f32 %v451, %v456
        %v459 = vadd.f32 %v457, %v458
        %v460 = vtanh.pop %v459
        %v461 = vmul.f32 %v455, %v460
        %s462 = scalar_lea.vmem %s132, 32 [#allocation6]
        %v463 = vld [vmem:[%s462] sm:$0xff]
        %v464 = vld [vmem:[%s462 + $0x8] sm:$0xff]
        %v465 = vunpack.c.l.bf16 %v463
        %v466 = vunpack.c.h.bf16 %v463
        %v467 = vunpack.c.l.bf16 %v464
        %v468 = vunpack.c.h.bf16 %v464
        %v469 = vpack.c.bf16 %v461, %v461
        %470 = vmatprep.subr.bf16.mxu0 %v194
        %471 = vmatpush1.bf16.msra.mxu0 %v193
        %472 = vmatprep.subr.bf16.mxu0 %v198
        %473 = vmatpush1.bf16.msra.mxu0 %v197
        %474 = vmatprep.subr.bf16.mxu0 %v202
        %475 = vmatpush1.bf16.msra.mxu0 %v201
        %476 = vmatprep.subr.bf16.mxu0 %v206
        %477 = vmatpush1.bf16.msra.mxu0 %v205
        %478 = vmatprep.subr.bf16.mxu0 %v210
        %479 = vmatpush1.bf16.msra.mxu0 %v209
        %480 = vmatprep.subr.bf16.mxu0 %v214
        %481 = vmatpush1.bf16.msra.mxu0 %v213
        %482 = vmatprep.subr.bf16.mxu0 %v218
        %483 = vmatpush1.bf16.msra.mxu0 %v217
        %484 = vmatprep.subr.bf16.mxu0 %v222
        %485 = vmatpush1.bf16.msra.mxu0 %v221
        %486 = vmatprep.subr.bf16.mxu0 0
        %487 = vmatpush1.bf16.msra.mxu0 0
        %488 = vmatprep.subr.bf16.mxu0 0
        %489 = vmatpush1.bf16.msra.mxu0 0
        %490 = vmatprep.subr.bf16.mxu0 0
        %491 = vmatpush1.bf16.msra.mxu0 0
        %492 = vmatprep.subr.bf16.mxu0 0
        %493 = vmatpush1.bf16.msra.mxu0 0
        %494 = vmatprep.subr.bf16.mxu0 0
        %495 = vmatpush1.bf16.msra.mxu0 0
        %496 = vmatprep.subr.bf16.mxu0 0
        %497 = vmatpush1.bf16.msra.mxu0 0
        %498 = vmatprep.subr.bf16.mxu0 0
        %499 = vmatpush1.bf16.msra.mxu0 0
        %500 = vmatprep.subr.bf16.mxu0 0
        %501 = vmatpush1.bf16.msra.mxu0 0
        %502 = vmatprep.mubr.bf16.mxu0 0
        %503 = vmatmul.mubr.bf16.gmra.mrb[0].mxu0 %v469
        %v504 = vpop.f32.mrb[0].mxu0
        %v505 = vadd.f32 0.0, %v504
        %v506 = vpop.f32.mrb[0].mxu0
        %v507 = vadd.f32 0.0, %v506
        %v508 = vpop.f32.mrb[0].mxu0
        %v509 = vpop.f32.mrb[0].mxu0
        %510 = vdwg.mxu0
        %511 = vmatprep.subr.bf16.mxu0 %v196
        %512 = vmatpush1.bf16.msra.mxu0 %v195
        %513 = vmatprep.subr.bf16.mxu0 %v200
        %514 = vmatpush1.bf16.msra.mxu0 %v199
        %515 = vmatprep.subr.bf16.mxu0 %v204
        %516 = vmatpush1.bf16.msra.mxu0 %v203
        %517 = vmatprep.subr.bf16.mxu0 %v208
        %518 = vmatpush1.bf16.msra.mxu0 %v207
        %519 = vmatprep.subr.bf16.mxu0 %v212
        %520 = vmatpush1.bf16.msra.mxu0 %v211
        %521 = vmatprep.subr.bf16.mxu0 %v216
        %522 = vmatpush1.bf16.msra.mxu0 %v215
        %523 = vmatprep.subr.bf16.mxu0 %v220
        %524 = vmatpush1.bf16.msra.mxu0 %v219
        %525 = vmatprep.subr.bf16.mxu0 %v224
        %526 = vmatpush1.bf16.msra.mxu0 %v223
        %527 = vmatprep.subr.bf16.mxu0 0
        %528 = vmatpush1.bf16.msra.mxu0 0
        %529 = vmatprep.subr.bf16.mxu0 0
        %530 = vmatpush1.bf16.msra.mxu0 0
        %531 = vmatprep.subr.bf16.mxu0 0
        %532 = vmatpush1.bf16.msra.mxu0 0
        %533 = vmatprep.subr.bf16.mxu0 0
        %534 = vmatpush1.bf16.msra.mxu0 0
        %535 = vmatprep.subr.bf16.mxu0 0
        %536 = vmatpush1.bf16.msra.mxu0 0
        %537 = vmatprep.subr.bf16.mxu0 0
        %538 = vmatpush1.bf16.msra.mxu0 0
        %539 = vmatprep.subr.bf16.mxu0 0
        %540 = vmatpush1.bf16.msra.mxu0 0
        %541 = vmatprep.subr.bf16.mxu0 0
        %542 = vmatpush1.bf16.msra.mxu0 0
        %543 = vmatprep.mubr.bf16.mxu0 0
        %544 = vmatmul.mubr.bf16.gmra.mrb[0].mxu0 %v469
        %v545 = vpop.f32.mrb[0].mxu0
        %v546 = vadd.f32 0.0, %v545
        %v547 = vpop.f32.mrb[0].mxu0
        %v548 = vadd.f32 0.0, %v547
        %v549 = vpop.f32.mrb[0].mxu0
        %v550 = vpop.f32.mrb[0].mxu0
        %551 = vdwg.mxu0
        %v552 = vadd.f32 %v465, %v505
        %v553 = vadd.f32 %v466, %v507
        %v554 = vadd.f32 %v467, %v546
        %v555 = vadd.f32 %v468, %v548
        %v556 = vxor.u32 %v552, 2147483648
        %v557 = vxor.u32 %v553, 2147483648
        %v558 = vxor.u32 %v554, 2147483648
        %v559 = vmul.f32 %v556, 1.442695
        %v560 = vpow.pop %v559
        %v561 = vmul.f32 %v557, 1.442695
        %v562 = vpow.pop %v561
        %v563 = vmul.f32 %v558, 1.442695
        %v564 = vpow.pop %v563
        %v565 = vadd.f32 %v560, 1.0
        %v566 = vadd.f32 %v562, 1.0
        %v567 = vadd.f32 %v564, 1.0
        %v568 = vrcp.pop %v565
        %v569 = vmul.f32 1.0, %v568
        %v570 = vrcp.pop %v566
        %v571 = vmul.f32 1.0, %v570
        %v572 = vrcp.pop %v567
        %v573 = vmul.f32 1.0, %v572
        %v574 = vtanh.pop %v555
        %v575 = vmul.f32 %v571, %v459
        %v576 = vmul.f32 %v569, %v574
        %v577 = vadd.f32 %v575, %v576
        %v578 = vtanh.pop %v577
        %v579 = vmul.f32 %v573, %v578
        %s580 = scalar_lea.vmem %s132, 48 [#allocation6]
        %v581 = vld [vmem:[%s580] sm:$0xff]
        %v582 = vld [vmem:[%s580 + $0x8] sm:$0xff]
        %v583 = vunpack.c.l.bf16 %v581
        %v584 = vunpack.c.h.bf16 %v581
        %v585 = vunpack.c.l.bf16 %v582
        %v586 = vunpack.c.h.bf16 %v582
        %v587 = vpack.c.bf16 %v579, %v579
        %588 = vmatprep.subr.bf16.mxu0 %v194
        %589 = vmatpush1.bf16.msra.mxu0 %v193
        %590 = vmatprep.subr.bf16.mxu0 %v198
        %591 = vmatpush1.bf16.msra.mxu0 %v197
        %592 = vmatprep.subr.bf16.mxu0 %v202
        %593 = vmatpush1.bf16.msra.mxu0 %v201
        %594 = vmatprep.subr.bf16.mxu0 %v206
        %595 = vmatpush1.bf16.msra.mxu0 %v205
        %596 = vmatprep.subr.bf16.mxu0 %v210
        %597 = vmatpush1.bf16.msra.mxu0 %v209
        %598 = vmatprep.subr.bf16.mxu0 %v214
        %599 = vmatpush1.bf16.msra.mxu0 %v213
        %600 = vmatprep.subr.bf16.mxu0 %v218
        %601 = vmatpush1.bf16.msra.mxu0 %v217
        %602 = vmatprep.subr.bf16.mxu0 %v222
        %603 = vmatpush1.bf16.msra.mxu0 %v221
        %604 = vmatprep.subr.bf16.mxu0 0
        %605 = vmatpush1.bf16.msra.mxu0 0
        %606 = vmatprep.subr.bf16.mxu0 0
        %607 = vmatpush1.bf16.msra.mxu0 0
        %608 = vmatprep.subr.bf16.mxu0 0
        %609 = vmatpush1.bf16.msra.mxu0 0
        %610 = vmatprep.subr.bf16.mxu0 0
        %611 = vmatpush1.bf16.msra.mxu0 0
        %612 = vmatprep.subr.bf16.mxu0 0
        %613 = vmatpush1.bf16.msra.mxu0 0
        %614 = vmatprep.subr.bf16.mxu0 0
        %615 = vmatpush1.bf16.msra.mxu0 0
        %616 = vmatprep.subr.bf16.mxu0 0
        %617 = vmatpush1.bf16.msra.mxu0 0
        %618 = vmatprep.subr.bf16.mxu0 0
        %619 = vmatpush1.bf16.msra.mxu0 0
        %620 = vmatprep.mubr.bf16.mxu0 0
        %621 = vmatmul.mubr.bf16.gmra.mrb[0].mxu0 %v587
        %v622 = vpop.f32.mrb[0].mxu0
        %v623 = vadd.f32 0.0, %v622
        %v624 = vpop.f32.mrb[0].mxu0
        %v625 = vadd.f32 0.0, %v624
        %v626 = vpop.f32.mrb[0].mxu0
        %v627 = vpop.f32.mrb[0].mxu0
        %628 = vdwg.mxu0
        %629 = vmatprep.subr.bf16.mxu0 %v196
        %630 = vmatpush1.bf16.msra.mxu0 %v195
        %631 = vmatprep.subr.bf16.mxu0 %v200
        %632 = vmatpush1.bf16.msra.mxu0 %v199
        %633 = vmatprep.subr.bf16.mxu0 %v204
        %634 = vmatpush1.bf16.msra.mxu0 %v203
        %635 = vmatprep.subr.bf16.mxu0 %v208
        %636 = vmatpush1.bf16.msra.mxu0 %v207
        %637 = vmatprep.subr.bf16.mxu0 %v212
        %638 = vmatpush1.bf16.msra.mxu0 %v211
        %639 = vmatprep.subr.bf16.mxu0 %v216
        %640 = vmatpush1.bf16.msra.mxu0 %v215
        %641 = vmatprep.subr.bf16.mxu0 %v220
        %642 = vmatpush1.bf16.msra.mxu0 %v219
        %643 = vmatprep.subr.bf16.mxu0 %v224
        %644 = vmatpush1.bf16.msra.mxu0 %v223
        %645 = vmatprep.subr.bf16.mxu0 0
        %646 = vmatpush1.bf16.msra.mxu0 0
        %647 = vmatprep.subr.bf16.mxu0 0
        %648 = vmatpush1.bf16.msra.mxu0 0
        %649 = vmatprep.subr.bf16.mxu0 0
        %650 = vmatpush1.bf16.msra.mxu0 0
        %651 = vmatprep.subr.bf16.mxu0 0
        %652 = vmatpush1.bf16.msra.mxu0 0
        %653 = vmatprep.subr.bf16.mxu0 0
        %654 = vmatpush1.bf16.msra.mxu0 0
        %655 = vmatprep.subr.bf16.mxu0 0
        %656 = vmatpush1.bf16.msra.mxu0 0
        %657 = vmatprep.subr.bf16.mxu0 0
        %658 = vmatpush1.bf16.msra.mxu0 0
        %659 = vmatprep.subr.bf16.mxu0 0
        %660 = vmatpush1.bf16.msra.mxu0 0
        %661 = vmatprep.mubr.bf16.mxu0 0
        %662 = vmatmul.mubr.bf16.gmra.mrb[0].mxu0 %v587
        %v663 = vpop.f32.mrb[0].mxu0
        %v664 = vadd.f32 0.0, %v663
        %v665 = vpop.f32.mrb[0].mxu0
        %v666 = vadd.f32 0.0, %v665
        %v667 = vpop.f32.mrb[0].mxu0
        %v668 = vpop.f32.mrb[0].mxu0
        %669 = vdwg.mxu0
        %v670 = vadd.f32 %v583, %v623
        %v671 = vadd.f32 %v584, %v625
        %v672 = vadd.f32 %v585, %v664
        %v673 = vadd.f32 %v586, %v666
        %v674 = vxor.u32 %v670, 2147483648
        %v675 = vxor.u32 %v671, 2147483648
        %v676 = vxor.u32 %v672, 2147483648
        %v677 = vmul.f32 %v674, 1.442695
        %v678 = vpow.pop %v677
        %v679 = vmul.f32 %v675, 1.442695
        %v680 = vpow.pop %v679
        %v681 = vmul.f32 %v676, 1.442695
        %v682 = vpow.pop %v681
        %v683 = vadd.f32 %v678, 1.0
        %v684 = vadd.f32 %v680, 1.0
        %v685 = vadd.f32 %v682, 1.0
        %v686 = vrcp.pop %v683
        %v687 = vmul.f32 1.0, %v686
        %v688 = vrcp.pop %v684
        %v689 = vmul.f32 1.0, %v688
        %v690 = vrcp.pop %v685
        %v691 = vmul.f32 1.0, %v690
        %v692 = vtanh.pop %v673
        %v693 = vmul.f32 %v689, %v577
        %v694 = vmul.f32 %v687, %v692
        %v695 = vadd.f32 %v693, %v694
        %v696 = vtanh.pop %v695
        %v697 = vmul.f32 %v691, %v696
        %698 = vst [vmem:[#allocation3] sm:$0xff] %v697
        %699 = vst [vmem:[#allocation4] sm:$0xff] %v695
        %p700 = scmp.eq.s32.totalorder %s22, 1
        // Predicated region
        $region33: #{tpu_custom_call.1} parent=23 // pred_check
          %p701 = pneg %p700
        $region34: #{tpu_custom_call.1} parent=23 // pred_check_branch
          %703 = sbr.rel (%p701) target = $region36
        $region35: #{tpu_custom_call.1} parent=23 // pred_region
          %v704 = vld [vmem:[#allocation3] sm:$0xff]
          %705 = vst [vmem:[#allocation9] sm:$0xff] %v704
        $region36: #{tpu_custom_call.1} parent=23 // pred_fallthru
          _
        // Predicated region
        $region37: #{tpu_custom_call.1} parent=23 // pred_check
          %p706 = pneg %p75
        $region38: #{tpu_custom_call.1} parent=23 // pred_check_branch
          %708 = sbr.rel (%p706) target = $region40
        $region39: #{tpu_custom_call.1} parent=23 // pred_region
          %s710 = ssub.s32 128, 128
          %711 = vsyncadd [#allocation8], %s710
          %s712 = smul.addr %s21, 128
          %s713 = scalar_lea.hbm %s2, %s712
          %s715 = sshll.u32 [#allocation9], 4
          %s716 = int_to_ptr.vmem [resolvable:$true] %s715
          %718 = dma.vmem_to_hbm [thread:$0]  %s716, 128, %s713, [#allocation8]
        $region40: #{tpu_custom_call.1} parent=23 // pred_fallthru
          _
        // Predicated region
        $region41: #{tpu_custom_call.1} parent=23 // pred_check
          %p719 = pneg %p75
        $region42: #{tpu_custom_call.1} parent=23 // pred_check_branch
          %721 = sbr.rel (%p719) target = $region44
        $region43: #{tpu_custom_call.1} parent=23 // pred_region
          %722 = dma.done [#allocation8], 128
        $region44: #{tpu_custom_call.1} parent=23 // pred_fallthru
          _
      $region24: #{tpu_custom_call.1} parent=5 // pred_fallthru
        _
      %p723 = scmp.le.s32.totalorder 2, %s12
      // Predicated region
      $region45: #{tpu_custom_call.1} parent=5 // pred_check
        %p724 = pneg %p723
      $region46: #{tpu_custom_call.1} parent=5 // pred_check_branch
        %726 = sbr.rel (%p724) target = $region48
      $region47: #{tpu_custom_call.1} parent=5 // pred_region
        %s727 = ssub.s32 %s12, 2
      $region48: #{tpu_custom_call.1} parent=5 // pred_fallthru
        _
    $region6: #{tpu_custom_call.1} parent=1 // loop_footer
      %s16 = sadd.s32 1, %s12
    $region7: #{tpu_custom_call.1} parent=1 // loop_footer_branch
      %11 = sbr.rel target = $region3
    $region8: #{tpu_custom_call.1} parent=1 // loop_exit
      _
    %728 = vsyncpa [#allocation7], 1
    %s729 = scalar_lea.sflag [#allocation7], 1
    %730 = vsyncpa %s729, 1
    %731 = vsyncpa [#allocation8], 1
    %s732 = scalar_lea.sflag [#allocation8], 1
    %733 = vsyncpa %s732, 1
  %734 = vsyncmov [#allocation5]
  %s735 = vpop.sfrf %734
  %p736 = scmp.eq.s32.totalorder %s735, 0
  %p737 = pneg %p736
  %739 = shalt.err (%p737)

</llo_original>
